<compile_context>
chip_gen: v6e
topology: v6e:2x2x1
jax: 0.10.0
libtpu: 0.0.40
codegen_flags: <defaults>
</compile_context>

<pallas_src>
import jax
import jax.numpy as jnp
from jax.experimental import pallas as pl
from jax.experimental.pallas import tpu as pltpu

_LANE = 128       # lane width (last dim) of a vreg
_SUBLANE = 8      # sublane width (second-to-last dim) of an f32 vreg
_F_IN = 5
_F_OUT = 5
_FI_PAD = _SUBLANE            # contraction dim padded to 8 (NOT 128)
_FO_PAD = _LANE               # output dim lane-dense at 128
_BIG_BATCH_TILE = 512         # rows per grid step for the large-B path
_GRID_THRESHOLD = _BIG_BATCH_TILE


def _round_up(n: int, m: int) -> int:
    return ((n + m - 1) // m) * m


def _linear_kernel(x_ref, wt_ref, o_ref):
    # y = x @ W.T with W.T pre-transposed & zero-padded once at init time, so
    # this is a straight MXU matmul on lane-dense tiles with f32 accumulation.
    # (Mosaic pads the K=8 contraction into the MXU internally; a VPU
    #  broadcast-MAC variant is possible but the dot is not the bottleneck.)
    o_ref[...] = jnp.dot(
        x_ref[...], wt_ref[...], preferred_element_type=jnp.float32
    ).astype(o_ref.dtype)


def prepare_weight(w: jax.Array) -> jax.Array:
    """One-time parameter prep: transpose + zero-pad W to (8, 128).

    Hoisted out of the per-call forward path so the transpose / pad /
    dynamic-update-slice HLOs run once at init, not on every forward call.
    """
    f_out, f_in = w.shape
    return jnp.zeros((_FI_PAD, _FO_PAD), w.dtype).at[:f_in, :f_out].set(w.T)


def simplenet_forward(x: jax.Array, wt_p: jax.Array,
                      f_out: int = _F_OUT) -> jax.Array:
    """Forward pass of SimpleNet: x @ W.T (W = 2*I), via Pallas on TPU."""
    B, f_in = x.shape
    itemsize = jnp.dtype(x.dtype).itemsize
    # Advisory scheduling hint: report logical work, not padded-dimension work.
    cost = pl.CostEstimate(
        flops=2 * B * f_in * f_out,
        transcendentals=0,
        bytes_accessed=(B * f_in + B * f_out + f_in * f_out) * itemsize,
    )

    if B < _GRID_THRESHOLD:
        # Small batch: one gridless block, no per-step pipeline overhead.
        # TODO(synk): for truly tiny batches a plain XLA `x @ w.T` (no custom
        # call boundary) is the cheapest end-to-end option; kept on the Pallas
        # path here so the kernel is exercised.
        b_pad = max(_SUBLANE, _round_up(B, _SUBLANE))
        x_p = jnp.zeros((b_pad, _FI_PAD), x.dtype).at[:B, :f_in].set(x)
        out_p = pl.pallas_call(
            _linear_kernel,
            out_shape=jax.ShapeDtypeStruct((b_pad, _FO_PAD), x.dtype),
            in_specs=[
                pl.BlockSpec(memory_space=pltpu.MemorySpace.VMEM),
                pl.BlockSpec(memory_space=pltpu.MemorySpace.VMEM),
            ],
            out_specs=pl.BlockSpec(memory_space=pltpu.MemorySpace.VMEM),
            cost_estimate=cost,
        )(x_p, wt_p)
        return out_p[:B, :f_out]

    # Large batch: 1-D grid over rows; weight block resident across steps
    # (index_map returns (0, 0)); batch axis "parallel" so v7x's two
    # TensorCores split the rows.  Per-step VMEM (double-buffered in/out +
    # weight) is well under even v5e's 16 MiB default scoped limit.
    tile_b = _BIG_BATCH_TILE
    b_pad = _round_up(B, tile_b)
    x_p = jnp.zeros((b_pad, _FI_PAD), x.dtype).at[:B, :f_in].set(x)
    out_p = pl.pallas_call(
        _linear_kernel,
        out_shape=jax.ShapeDtypeStruct((b_pad, _FO_PAD), x.dtype),
        grid=(b_pad // tile_b,),
        in_specs=[
            pl.BlockSpec((tile_b, _FI_PAD), lambda i: (i, 0)),
            pl.BlockSpec((_FI_PAD, _FO_PAD), lambda i: (0, 0)),
        ],
        out_specs=pl.BlockSpec((tile_b, _FO_PAD), lambda i: (i, 0)),
        compiler_params=pltpu.CompilerParams(
            dimension_semantics=("parallel",),
        ),
        cost_estimate=cost,
    )(x_p, wt_p)
    return out_p[:B, :f_out]


if __name__ == "__main__":
    key = jax.random.PRNGKey(0)

    # Deterministic parameter init matching the module's __init__:
    # Linear(5, 5, bias=False) with weight = 2.0 * eye(5).
    w = 2.0 * jnp.eye(_F_OUT, _F_IN, dtype=jnp.float32)
    wt_p = prepare_weight(w)  # one-time prep, outside the forward path
    jax.block_until_ready(wt_p)

    # Small mini-batch of length-5 vectors -> gridless single-block path.
    batch = 8
    x = jax.random.normal(key, (batch, _F_IN), dtype=jnp.float32)
    y = simplenet_forward(x, wt_p)
    jax.block_until_ready(y)
    assert y.shape == (batch, _F_OUT), f"bad output shape {y.shape}"
    assert jnp.allclose(y, x @ w.T, atol=1e-6), "mismatch vs x @ w.T"
    assert jnp.allclose(y, 2.0 * x, atol=1e-6), "mismatch vs 2*x reference"

    # Larger batch exercises the gridded (parallel batch axis) path.
    big = 1024
    xb = jax.random.normal(jax.random.PRNGKey(1), (big, _F_IN),
                           dtype=jnp.float32)
    yb = simplenet_forward(xb, wt_p)
    jax.block_until_ready(yb)
    assert yb.shape == (big, _F_OUT), f"bad output shape {yb.shape}"
    assert jnp.allclose(yb, 2.0 * xb, atol=1e-6), "mismatch vs 2*x (grid path)"

    print("KERNEL_OK")
</pallas_src>

<mosaic_0001>
module attributes {stable_mosaic.version = 11 : i64} {
  func.func @_linear_kernel(%arg0: memref<8x8xf32, #tpu.memory_space<vmem>>, %arg1: memref<8x128xf32, #tpu.memory_space<vmem>>, %arg2: memref<8x128xf32, #tpu.memory_space<vmem>>) attributes {dimension_semantics = [], scalar_prefetch = 0 : i64, scratch_operands = 0 : i64, tpu.core_type = #tpu.core_type<tc>} {
    %c0 = arith.constant 0 : index
    %c0_0 = arith.constant 0 : index
    %0 = vector.load %arg0[%c0, %c0_0] : memref<8x8xf32, #tpu.memory_space<vmem>>, vector<8x8xf32>
    %c0_1 = arith.constant 0 : index
    %c0_2 = arith.constant 0 : index
    %1 = vector.load %arg1[%c0_1, %c0_2] : memref<8x128xf32, #tpu.memory_space<vmem>>, vector<8x128xf32>
    %cst = arith.constant dense<0.000000e+00> : vector<8x128xf32>
    %2 = tpu.matmul %0, %1, %cst {dimension_numbers = #tpu.dot_dimension_numbers<[1], [0], [0], [1], [0, 0, 1, 1], [], []>} : vector<8x8xf32>, vector<8x128xf32>, vector<8x128xf32> -> vector<8x128xf32>
    %c0_3 = arith.constant 0 : index
    %c0_4 = arith.constant 0 : index
    %3 = vector.load %arg2[%c0_3, %c0_4] : memref<8x128xf32, #tpu.memory_space<vmem>>, vector<8x128xf32>
    tpu.vector_store %arg2[%c0_3, %c0_4], %2 {strides = array<i32>} : memref<8x128xf32, #tpu.memory_space<vmem>>, vector<8x128xf32>,
    return
  }
}

</mosaic_0001>

<llo_original>
// kernel: tpu_custom_call.1
$region0: #{tpu_custom_call.1}
  #allocation0 [shape = 'u32[]', space=smem, size = 0x4, offset = 0x4, fixed_abs, tag = 'smem constant byte address 0x4 - core index']
  #allocation1 [shape = 'u32[144,128]{1,0:T(1,128)}', space=vmem, size = 0x12000, scoped, tag = 'internal scratch']
  %s0 = inlined_call_operand.hbm [shape: f32[8,8], index: 0, kind: input, shape index: {}]
  %s1 = inlined_call_operand.hbm [shape: f32[8,128], index: 1, kind: input, shape index: {}]
  %s2 = inlined_call_operand.hbm [shape: f32[8,128], index: 2, kind: output, shape index: {}]
  %s3 = sld [smem:[#allocation0]]
  $region26: #{tpu_custom_call.1} parent=0
    _
  %s5 = ssub.s32 1, %s3
  %s6 = scalar_select 0, %s5, %s3
  $region1: #{tpu_custom_call.1} parent=0
    #allocation2 [shape = 'u8[4096]{0}', space=vmem, size = 0x1000, scoped, tag = 'input window, operand 0, single buffered']
    #allocation3 [shape = 's32[1]{0}', space=sflag, size = 0x4, scoped, tag = 'scoped memory for tpu_custom_call.1']
    #allocation4 [shape = 's32[1]{0}', space=sflag, size = 0x4, scoped, tag = 'scoped memory for tpu_custom_call.1']
    #allocation5 [shape = 'u8[4096]{0}', space=vmem, size = 0x1000, scoped, tag = 'input window, operand 1, single buffered']
    #allocation6 [shape = 's32[1]{0}', space=sflag, size = 0x4, scoped, tag = 'scoped memory for tpu_custom_call.1']
    #allocation7 [shape = 'u8[4096]{0}', space=vmem, size = 0x1000, scoped, tag = 'output window, operand 0, single buffered']
    %7 = vsyncpa [#allocation3], 0
    %8 = vsyncpa [#allocation6], 0
    %9 = vsyncpa [#allocation4], 0
    // Predicated region
    $region2: #{tpu_custom_call.1} parent=1 // pred_check
      _
    $region3: #{tpu_custom_call.1} parent=1 // pred_check_branch
      %11 = sbr.rel (0) target = $region5
    $region4: #{tpu_custom_call.1} parent=1 // pred_region
      %s13 = ssub.s32 128, 128
      %14 = vsyncadd [#allocation3], %s13
      %s16 = sshll.u32 [#allocation2], 4
      %s17 = int_to_ptr.vmem [resolvable:$true] %s16
      %19 = dma.hbm_to_vmem [thread:$0]  %s0, 128, %s17, [#allocation3]
    $region5: #{tpu_custom_call.1} parent=1 // pred_fallthru
      _
    // Predicated region
    $region6: #{tpu_custom_call.1} parent=1 // pred_check
      _
    $region7: #{tpu_custom_call.1} parent=1 // pred_check_branch
      %21 = sbr.rel (0) target = $region9
    $region8: #{tpu_custom_call.1} parent=1 // pred_region
      %s23 = ssub.s32 128, 128
      %24 = vsyncadd [#allocation6], %s23
      %s26 = sshll.u32 [#allocation5], 4
      %s27 = int_to_ptr.vmem [resolvable:$true] %s26
      %29 = dma.hbm_to_vmem [thread:$0]  %s1, 128, %s27, [#allocation6]
    $region9: #{tpu_custom_call.1} parent=1 // pred_fallthru
      _
    // Predicated region
    $region10: #{tpu_custom_call.1} parent=1 // pred_check
      _
    $region11: #{tpu_custom_call.1} parent=1 // pred_check_branch
      %31 = sbr.rel (0) target = $region13
    $region12: #{tpu_custom_call.1} parent=1 // pred_region
      %32 = dma.done [#allocation3], 128
    $region13: #{tpu_custom_call.1} parent=1 // pred_fallthru
      _
    // Predicated region
    $region14: #{tpu_custom_call.1} parent=1 // pred_check
      _
    $region15: #{tpu_custom_call.1} parent=1 // pred_check_branch
      %34 = sbr.rel (0) target = $region17
    $region16: #{tpu_custom_call.1} parent=1 // pred_region
      %35 = dma.done [#allocation6], 128
    $region17: #{tpu_custom_call.1} parent=1 // pred_fallthru
      _
    %v36 = vld [vmem:[#allocation2] sm:$0xff]
    %v37 = vld [vmem:[#allocation5] sm:$0xff]
    %vm38 = vcmask 64512
    %v40 = vsel %vm38, %v36, 0
    %42 = vmatprep.subr.mxu0 0.0
    %43 = vmatpush1.msra.mxu0 0.0
    %44 = vmatprep.subr.mxu0 0.0
    %45 = vmatpush1.msra.mxu0 0.0
    %46 = vmatprep.subr.mxu0 0.0
    %47 = vmatpush1.msra.mxu0 0.0
    %48 = vmatprep.subr.mxu0 0.0
    %49 = vmatpush1.msra.mxu0 0.0
    %50 = vmatprep.subr.mxu0 0.0
    %51 = vmatpush1.msra.mxu0 0.0
    %52 = vmatprep.subr.mxu0 0.0
    %53 = vmatpush1.msra.mxu0 0.0
    %54 = vmatprep.subr.mxu0 0.0
    %55 = vmatpush1.msra.mxu0 0.0
    %56 = vmatprep.subr.mxu0 0.0
    %57 = vmatpush1.msra.mxu0 0.0
    %58 = vmatprep.subr.mxu0 0.0
    %59 = vmatpush1.msra.mxu0 0.0
    %60 = vmatprep.subr.mxu0 0.0
    %61 = vmatpush1.msra.mxu0 0.0
    %62 = vmatprep.subr.mxu0 0.0
    %63 = vmatpush1.msra.mxu0 0.0
    %64 = vmatprep.subr.mxu0 0.0
    %65 = vmatpush1.msra.mxu0 0.0
    %66 = vmatprep.subr.mxu0 0.0
    %67 = vmatpush1.msra.mxu0 0.0
    %68 = vmatprep.subr.mxu0 0.0
    %69 = vmatpush1.msra.mxu0 0.0
    %70 = vmatprep.subr.mxu0 0.0
    %71 = vmatpush1.msra.mxu0 0.0
    %72 = vmatprep.subr.mxu0 0.0
    %73 = vmatpush1.msra.mxu0 %v37
    %74 = vmatprep.subr.mxu0 0.0
    %75 = vmatpush2.msra.mxu0 0.0
    %76 = vmatprep.subr.mxu0 0.0
    %77 = vmatpush2.msra.mxu0 0.0
    %78 = vmatprep.subr.mxu0 0.0
    %79 = vmatpush2.msra.mxu0 0.0
    %80 = vmatprep.subr.mxu0 0.0
    %81 = vmatpush2.msra.mxu0 0.0
    %82 = vmatprep.subr.mxu0 0.0
    %83 = vmatpush2.msra.mxu0 0.0
    %84 = vmatprep.subr.mxu0 0.0
    %85 = vmatpush2.msra.mxu0 0.0
    %86 = vmatprep.subr.mxu0 0.0
    %87 = vmatpush2.msra.mxu0 0.0
    %88 = vmatprep.subr.mxu0 0.0
    %89 = vmatpush2.msra.mxu0 0.0
    %90 = vmatprep.subr.mxu0 0.0
    %91 = vmatpush2.msra.mxu0 0.0
    %92 = vmatprep.subr.mxu0 0.0
    %93 = vmatpush2.msra.mxu0 0.0
    %94 = vmatprep.subr.mxu0 0.0
    %95 = vmatpush2.msra.mxu0 0.0
    %96 = vmatprep.subr.mxu0 0.0
    %97 = vmatpush2.msra.mxu0 0.0
    %98 = vmatprep.subr.mxu0 0.0
    %99 = vmatpush2.msra.mxu0 0.0
    %100 = vmatprep.subr.mxu0 0.0
    %101 = vmatpush2.msra.mxu0 0.0
    %102 = vmatprep.subr.mxu0 0.0
    %103 = vmatpush2.msra.mxu0 0.0
    %104 = vmatprep.subr.mxu0 0.0
    %105 = vmatpush2.msra.mxu0 0.0
    %106 = vmatprep.mubr.f32.mxu0 0.0
    %107 = vmatmul.mubr.f32.gmra.mxu0 %v40
    %v108 = vpop.f32.mrf.mxu0
    %v109 = vadd.f32 0.0, %v108
    %v110 = vpop.f32.mrf.mxu0
    %111 = vdwg.mxu0
    %112 = vst [vmem:[#allocation7] sm:$0xff] %v109
    // Predicated region
    $region18: #{tpu_custom_call.1} parent=1 // pred_check
      _
    $region19: #{tpu_custom_call.1} parent=1 // pred_check_branch
      %114 = sbr.rel (0) target = $region21
    $region20: #{tpu_custom_call.1} parent=1 // pred_region
      %s116 = ssub.s32 128, 128
      %117 = vsyncadd [#allocation4], %s116
      %s119 = sshll.u32 [#allocation7], 4
      %s120 = int_to_ptr.vmem [resolvable:$true] %s119
      %122 = dma.vmem_to_hbm [thread:$0]  %s120, 128, %s2, [#allocation4]
    $region21: #{tpu_custom_call.1} parent=1 // pred_fallthru
      _
    // Predicated region
    $region22: #{tpu_custom_call.1} parent=1 // pred_check
      _
    $region23: #{tpu_custom_call.1} parent=1 // pred_check_branch
      %124 = sbr.rel (0) target = $region25
    $region24: #{tpu_custom_call.1} parent=1 // pred_region
      %125 = dma.done [#allocation4], 128
    $region25: #{tpu_custom_call.1} parent=1 // pred_fallthru
      _
    %126 = vsyncpa [#allocation3], 1
    %127 = vsyncpa [#allocation6], 1
    %128 = vsyncpa [#allocation4], 1

</llo_original>
